<compile_context>
chip_gen: v5e
topology: v5e:2x2
jax: 0.10.0
libtpu: 0.0.40
codegen_flags: <defaults>
</compile_context>

<pallas_src>
import functools

import jax
import jax.numpy as jnp
from jax.experimental import pallas as pl
from jax.experimental.pallas import tpu as pltpu


# Working-set budget that fits the smallest per-core VMEM across generations
# (v7x: 64 MiB physical, 32 MiB default scoped).  The scoped limit we request
# (_VMEM_LIMIT) stays comfortably below v7x's physical 64 MiB.
_VMEM_BUDGET = 26 * 1024 * 1024
_VMEM_LIMIT = 48 * 1024 * 1024
_TN_CAP = 2048          # per-step lane-width cap (step-overhead vs. v7x VMEM)


def _cdiv(a, b):
    return -(-a // b)


def _round_up(x, m):
    return ((x + m - 1) // m) * m


def _vmem_limit(working_set_bytes):
    return int(min(max(working_set_bytes + (8 << 20), 32 << 20), _VMEM_LIMIT))


def _plan_lane_tiles(nc, tn_cap, want_two_steps):
    """Pick (nc_pad, tn) with tn % 128 == 0 and nc_pad % tn == 0.

    When `want_two_steps`, force >= 2 lane steps (when nc allows it) so the
    parallel grid axis can be sharded across v7x's two TensorCores.
    """
    nc_pad = _round_up(max(nc, 1), 128)
    tn_cap = max(128, (tn_cap // 128) * 128)
    n_steps = _cdiv(nc_pad, tn_cap)
    if want_two_steps and n_steps < 2 and nc_pad >= 256:
        n_steps = 2
    tn = _round_up(_cdiv(nc_pad, n_steps), 128)
    return tn * n_steps, tn


def _mix_kernel(r_ref, x_ref, o_ref, *, compute_dtype):
    """Single-step contraction: K = N fits one pass, so no accumulator needed."""
    o_ref[...] = jnp.dot(
        r_ref[...].astype(compute_dtype),
        x_ref[...].astype(compute_dtype),
        preferred_element_type=jnp.float32,
    ).astype(o_ref.dtype)


def _mix_kernel_acc(r_ref, x_ref, o_ref, acc_ref, *, compute_dtype):
    """Fallback for very large N: tiled contraction with an f32 accumulator."""
    @pl.when(pl.program_id(2) == 0)
    def _():
        acc_ref[...] = jnp.zeros_like(acc_ref)

    acc_ref[...] += jnp.dot(
        r_ref[...].astype(compute_dtype),
        x_ref[...].astype(compute_dtype),
        preferred_element_type=jnp.float32,
    )

    @pl.when(pl.program_id(2) == pl.num_programs(2) - 1)
    def _():
        o_ref[...] = acc_ref[...].astype(o_ref.dtype)


def _mix_per_batch(x3, r, compute_dtype, fixed, per_lane, out_dtype):
    """x3: (B, N, C) with C >= 128 — no wrapper transposes, grid (B, lane tiles)."""
    B, N, C = x3.shape
    tn_cap = min(_TN_CAP, (_VMEM_BUDGET - fixed) // per_lane)
    # B >= 2 already provides a >=2-long parallel axis; don't force a lane split.
    c_pad, tn = _plan_lane_tiles(C, tn_cap, want_two_steps=False)
    if c_pad != C:
        x3 = jnp.pad(x3, ((0, 0), (0, 0), (0, c_pad - C)))

    kernel = functools.partial(_mix_kernel, compute_dtype=compute_dtype)
    out = pl.pallas_call(
        kernel,
        out_shape=jax.ShapeDtypeStruct((B, N, c_pad), out_dtype),
        grid_spec=pltpu.PrefetchScalarGridSpec(
            num_scalar_prefetch=0,
            grid=(B, c_pad // tn),
            in_specs=[
                # R: constant block index -> fetched once, stays VMEM-resident.
                pl.BlockSpec((N, N), lambda b, j: (0, 0)),
                pl.BlockSpec((pl.Squeezed(), N, tn), lambda b, j: (b, 0, j)),
            ],
            out_specs=pl.BlockSpec((pl.Squeezed(), N, tn), lambda b, j: (b, 0, j)),
        ),
        compiler_params=pltpu.CompilerParams(
            dimension_semantics=("parallel", "parallel"),
            vmem_limit_bytes=_vmem_limit(fixed + tn * per_lane),
        ),
    )(r, x3)
    if c_pad != C:
        out = out[:, :, :C]
    return out


def _mix_folded(x3, r, compute_dtype, fixed, per_lane, out_dtype):
    """Fold batch into lanes ((B, N, C) -> (N, B*C)) when C < 128 or B == 1."""
    B, N, C = x3.shape
    NC = B * C
    x2 = jnp.transpose(x3, (1, 0, 2)).reshape(N, NC)   # layout-only when B == 1
    tn_cap = min(_TN_CAP, (_VMEM_BUDGET - fixed) // per_lane)
    nc_pad, tn = _plan_lane_tiles(NC, tn_cap, want_two_steps=True)
    if nc_pad != NC:
        x2 = jnp.pad(x2, ((0, 0), (0, nc_pad - NC)))

    kernel = functools.partial(_mix_kernel, compute_dtype=compute_dtype)
    out = pl.pallas_call(
        kernel,
        out_shape=jax.ShapeDtypeStruct((N, nc_pad), out_dtype),
        grid_spec=pltpu.PrefetchScalarGridSpec(
            num_scalar_prefetch=0,
            grid=(nc_pad // tn,),
            in_specs=[
                pl.BlockSpec((N, N), lambda j: (0, 0)),      # R, VMEM-resident
                pl.BlockSpec((N, tn), lambda j: (0, j)),
            ],
            out_specs=pl.BlockSpec((N, tn), lambda j: (0, j)),
        ),
        compiler_params=pltpu.CompilerParams(
            dimension_semantics=("parallel",),
            vmem_limit_bytes=_vmem_limit(fixed + tn * per_lane),
        ),
    )(r, x2)
    if nc_pad != NC:
        out = out[:, :NC]
    return jnp.transpose(out.reshape(N, B, C), (1, 0, 2))


def _mix_folded_ktiled(x3, r, compute_dtype, out_dtype):
    """Very large N (R cannot stay resident): classic tiled matmul, k-axis last."""
    # TODO(synk): a per-batch large-N variant would avoid the fold transposes.
    B, N, C = x3.shape
    NC = B * C
    x2 = jnp.transpose(x3, (1, 0, 2)).reshape(N, NC)

    tm, tk = 256, 512
    r_bytes = jnp.dtype(r.dtype).itemsize
    x_bytes = jnp.dtype(x2.dtype).itemsize
    o_bytes = jnp.dtype(out_dtype).itemsize
    fixed = 2 * tm * tk * r_bytes
    per_lane = 2 * tk * x_bytes + 2 * tm * o_bytes + tm * 4    # + f32 accumulator
    tn_cap = min(_TN_CAP, (_VMEM_BUDGET - fixed) // per_lane)
    nc_pad, tn = _plan_lane_tiles(NC, tn_cap, want_two_steps=True)

    m_pad = _round_up(N, tm)
    k_pad = _round_up(N, tk)
    # Zero-padding K is safe for the reduction: padded terms contribute 0.
    r_p = jnp.pad(r, ((0, m_pad - N), (0, k_pad - N)))
    x_p = jnp.pad(x2, ((0, k_pad - N), (0, nc_pad - NC)))

    kernel = functools.partial(_mix_kernel_acc, compute_dtype=compute_dtype)
    out = pl.pallas_call(
        kernel,
        out_shape=jax.ShapeDtypeStruct((m_pad, nc_pad), out_dtype),
        grid_spec=pltpu.PrefetchScalarGridSpec(
            num_scalar_prefetch=0,
            grid=(m_pad // tm, nc_pad // tn, k_pad // tk),
            in_specs=[
                pl.BlockSpec((tm, tk), lambda i, j, k: (i, k)),
                pl.BlockSpec((tk, tn), lambda i, j, k: (k, j)),
            ],
            out_specs=pl.BlockSpec((tm, tn), lambda i, j, k: (i, j)),
            scratch_shapes=[pltpu.VMEM((tm, tn), jnp.float32)],
        ),
        compiler_params=pltpu.CompilerParams(
            dimension_semantics=("parallel", "parallel", "arbitrary"),
            vmem_limit_bytes=_vmem_limit(fixed + tn * per_lane),
        ),
    )(r_p, x_p)
    out = out[:N, :NC]
    return jnp.transpose(out.reshape(N, B, C), (1, 0, 2))


def random_mixing(x, random_matrix, *, compute_dtype=jnp.bfloat16):
    """x: (B, H, W, C); random_matrix: (H*W, H*W).  Returns (B, H, W, C)."""
    B, H, W, C = x.shape
    N = H * W
    assert random_matrix.shape == (N, N)
    out_dtype = x.dtype

    # Cast R once in the wrapper: tiny array, halves its resident VMEM footprint
    # and gives the MXU native-bf16 operands (f32 accumulation in the kernel).
    r = random_matrix.astype(compute_dtype)

    r_bytes = jnp.dtype(compute_dtype).itemsize
    x_bytes = jnp.dtype(x.dtype).itemsize
    o_bytes = jnp.dtype(out_dtype).itemsize

    # Can the full (N, N) mixing matrix stay VMEM-resident (double-buffered),
    # together with at least a 128-lane double-buffered X/out tile?
    fixed = 2 * N * N * r_bytes
    per_lane = 2 * N * x_bytes + 2 * N * o_bytes
    resident_ok = fixed + 128 * per_lane <= _VMEM_BUDGET

    x3 = x.reshape(B, N, C)
    if resident_ok and C >= 128 and B > 1:
        out = _mix_per_batch(x3, r, compute_dtype, fixed, per_lane, out_dtype)
    elif resident_ok:
        out = _mix_folded(x3, r, compute_dtype, fixed, per_lane, out_dtype)
    else:
        out = _mix_folded_ktiled(x3, r, compute_dtype, out_dtype)
    return out.reshape(B, H, W, C)


if __name__ == "__main__":
    key = jax.random.PRNGKey(0)
    k1, k2, k3, k4 = jax.random.split(key, 4)

    # Case 1: narrow channels (C < 128) -> folded / lane-packed path.
    B, H, W, C = 2, 16, 16, 32
    N = H * W
    x = jax.random.normal(k1, (B, H, W, C), dtype=jnp.float32)
    # Fixed, non-trainable mixing matrix: softmax(rand(N, N), dim=-1), as in __init__.
    r = jax.nn.softmax(jax.random.uniform(k2, (N, N), dtype=jnp.float32), axis=-1)

    y = jax.block_until_ready(random_mixing(x, r))
    y_ref = jnp.einsum(
        "mn,bnc->bmc", r, x.reshape(B, N, C),
        precision=jax.lax.Precision.HIGHEST,
    ).reshape(B, H, W, C)
    assert y.shape == x.shape and y.dtype == x.dtype
    err1 = float(jnp.max(jnp.abs(y - y_ref)))
    # bf16 operands + f32 accumulation: expected max error ~1e-3; a real
    # indexing/accumulation bug would be O(output magnitude) ~ 0.1.
    assert err1 < 1e-2, f"folded-path max abs error {err1}"

    # Case 2: lane-dense channels (C >= 128) -> per-batch path (no transposes).
    B2, H2, W2, C2 = 2, 8, 8, 128
    N2 = H2 * W2
    x2 = jax.random.normal(k3, (B2, H2, W2, C2), dtype=jnp.float32)
    r2 = jax.nn.softmax(jax.random.uniform(k4, (N2, N2), dtype=jnp.float32), axis=-1)

    y2 = jax.block_until_ready(random_mixing(x2, r2))
    y2_ref = jnp.einsum(
        "mn,bnc->bmc", r2, x2.reshape(B2, N2, C2),
        precision=jax.lax.Precision.HIGHEST,
    ).reshape(B2, H2, W2, C2)
    assert y2.shape == x2.shape and y2.dtype == x2.dtype
    err2 = float(jnp.max(jnp.abs(y2 - y2_ref)))
    assert err2 < 1e-2, f"per-batch-path max abs error {err2}"

    print("KERNEL_OK")
</pallas_src>

<mosaic_0001>
module attributes {stable_mosaic.version = 11 : i64} {
  func.func @_mix_kernel(%arg0: i32, %arg1: memref<256x256xbf16, #tpu.memory_space<vmem>>, %arg2: memref<256x128xf32, #tpu.memory_space<vmem>>, %arg3: memref<256x128xf32, #tpu.memory_space<vmem>>) attributes {dimension_semantics = [#tpu.dimension_semantics<parallel>], iteration_bounds = array<i64: 1>, scalar_prefetch = 0 : i64, scratch_operands = 0 : i64, tpu.core_type = #tpu.core_type<tc>, window_params = [{pipeline_mode = #tpu.pipeline_mode<synchronous>, transform_indices = @transform_0, window_bounds = array<i64: 256, 256>}, {transform_indices = @transform_1, window_bounds = array<i64: 256, 128>}, {transform_indices = @transform_2, window_bounds = array<i64: 256, 128>}]} {
    %c0 = arith.constant 0 : index
    %c0_0 = arith.constant 0 : index
    %0 = vector.load %arg1[%c0, %c0_0] : memref<256x256xbf16, #tpu.memory_space<vmem>>, vector<256x256xbf16>
    %c0_1 = arith.constant 0 : index
    %c0_2 = arith.constant 0 : index
    %1 = vector.load %arg2[%c0_1, %c0_2] : memref<256x128xf32, #tpu.memory_space<vmem>>, vector<256x128xf32>
    %2 = arith.truncf %1 : vector<256x128xf32> to vector<256x128xbf16>
    %cst = arith.constant dense<0.000000e+00> : vector<256x128xf32>
    %3 = tpu.matmul %0, %2, %cst {dimension_numbers = #tpu.dot_dimension_numbers<[1], [0], [0], [1], [0, 0, 1, 1], [], []>} : vector<256x256xbf16>, vector<256x128xbf16>, vector<256x128xf32> -> vector<256x128xf32>
    %c0_3 = arith.constant 0 : index
    %c0_4 = arith.constant 0 : index
    %4 = vector.load %arg3[%c0_3, %c0_4] : memref<256x128xf32, #tpu.memory_space<vmem>>, vector<256x128xf32>
    tpu.vector_store %arg3[%c0_3, %c0_4], %3 {strides = array<i32>} : memref<256x128xf32, #tpu.memory_space<vmem>>, vector<256x128xf32>,
    return
  }
  func.func @transform_0(%arg0: i32) -> (i32, i32) {
    %c0_i32 = arith.constant 0 : i32
    %c0_i32_0 = arith.constant 0 : i32
    %c0_i32_1 = arith.constant 0 : i32
    return %c0_i32, %c0_i32_0 : i32, i32
  }
  func.func @transform_1(%arg0: i32) -> (i32, i32) {
    %c0_i32 = arith.constant 0 : i32
    %c0_i32_0 = arith.constant 0 : i32
    return %c0_i32, %arg0 : i32, i32
  }
  func.func @transform_2(%arg0: i32) -> (i32, i32) {
    %c0_i32 = arith.constant 0 : i32
    %c0_i32_0 = arith.constant 0 : i32
    return %c0_i32, %arg0 : i32, i32
  }
}

</mosaic_0001>

<llo_original>
// kernel: tpu_custom_call.1
$region0: #{tpu_custom_call.1}
  #allocation0 [shape = 'u32[]', space=smem, size = 0x4, offset = 0x4, fixed_abs, tag = 'smem constant byte address 0x4 - core index']
  #allocation1 [shape = 'u32[72,128]{1,0:T(1,128)}', space=vmem, size = 0x9000, scoped, tag = 'internal scratch']
  %s0 = inlined_call_operand.hbm [shape: bf16[256,256], index: 0, kind: input, shape index: {}]
  %s1 = inlined_call_operand.hbm [shape: f32[256,128], index: 1, kind: input, shape index: {}]
  %s2 = inlined_call_operand.hbm [shape: f32[256,128], index: 2, kind: output, shape index: {}]
  %s3 = sld [smem:[#allocation0]]
  $region26: #{tpu_custom_call.1} parent=0
    _
  %s5 = ssub.s32 1, %s3
  %s6 = scalar_select 0, %s5, %s3
  $region1: #{tpu_custom_call.1} parent=0
    #allocation2 [shape = 'u8[131072]{0}', space=vmem, size = 0x20000, scoped, tag = 'input window, operand 0, single buffered']
    #allocation3 [shape = 's32[1]{0}', space=sflag, size = 0x4, scoped, tag = 'scoped memory for tpu_custom_call.1']
    #allocation4 [shape = 's32[1]{0}', space=sflag, size = 0x4, scoped, tag = 'scoped memory for tpu_custom_call.1']
    #allocation5 [shape = 'u8[131072]{0}', space=vmem, size = 0x20000, scoped, tag = 'input window, operand 1, single buffered']
    #allocation6 [shape = 's32[1]{0}', space=sflag, size = 0x4, scoped, tag = 'scoped memory for tpu_custom_call.1']
    #allocation7 [shape = 'u8[131072]{0}', space=vmem, size = 0x20000, scoped, tag = 'output window, operand 0, single buffered']
    %7 = vsyncpa [#allocation3], 0
    %8 = vsyncpa [#allocation6], 0
    %9 = vsyncpa [#allocation4], 0
    // Predicated region
    $region2: #{tpu_custom_call.1} parent=1 // pred_check
      _
    $region3: #{tpu_custom_call.1} parent=1 // pred_check_branch
      %11 = sbr.rel (0) target = $region5
    $region4: #{tpu_custom_call.1} parent=1 // pred_region
      %13 = vsyncadd [#allocation3], 0
      %s14 = sshll.u32 %s0, 4
      %s15 = int_to_ptr.hbm [resolvable:$true] %s14
      %s16 = sshll.u32 [#allocation2], 4
      %s17 = int_to_ptr.vmem [resolvable:$true] %s16
      %22 = dma.hbm_to_vmem [thread:$0]  %s15, 4096, %s17, [#allocation3], 128, 128, 8
    $region5: #{tpu_custom_call.1} parent=1 // pred_fallthru
      _
    // Predicated region
    $region6: #{tpu_custom_call.1} parent=1 // pred_check
      _
    $region7: #{tpu_custom_call.1} parent=1 // pred_check_branch
      %24 = sbr.rel (0) target = $region9
    $region8: #{tpu_custom_call.1} parent=1 // pred_region
      %26 = vsyncadd [#allocation6], 0
      %s27 = sshll.u32 %s1, 4
      %s28 = int_to_ptr.hbm [resolvable:$true] %s27
      %s29 = sshll.u32 [#allocation5], 4
      %s30 = int_to_ptr.vmem [resolvable:$true] %s29
      %35 = dma.hbm_to_vmem [thread:$0]  %s28, 4096, %s30, [#allocation6], 128, 128, 8
    $region9: #{tpu_custom_call.1} parent=1 // pred_fallthru
      _
    // Predicated region
    $region10: #{tpu_custom_call.1} parent=1 // pred_check
      _
    $region11: #{tpu_custom_call.1} parent=1 // pred_check_branch
      %37 = sbr.rel (0) target = $region13
    $region12: #{tpu_custom_call.1} parent=1 // pred_region
      %39 = dma.done [#allocation3], 4096
    $region13: #{tpu_custom_call.1} parent=1 // pred_fallthru
      _
    // Predicated region
    $region14: #{tpu_custom_call.1} parent=1 // pred_check
      _
    $region15: #{tpu_custom_call.1} parent=1 // pred_check_branch
      %41 = sbr.rel (0) target = $region17
    $region16: #{tpu_custom_call.1} parent=1 // pred_region
      %43 = dma.done [#allocation6], 4096
    $region17: #{tpu_custom_call.1} parent=1 // pred_fallthru
      _
    %v44 = vld [vmem:[#allocation2] sm:$0xff]
    %v45 = vld [vmem:[#allocation2 + $0x8] sm:$0xff]
    %v46 = vld [vmem:[#allocation2 + $0x10] sm:$0xff]
    %v47 = vld [vmem:[#allocation2 + $0x18] sm:$0xff]
    %v48 = vld [vmem:[#allocation2 + $0x20] sm:$0xff]
    %v49 = vld [vmem:[#allocation2 + $0x28] sm:$0xff]
    %v50 = vld [vmem:[#allocation2 + $0x30] sm:$0xff]
    %v51 = vld [vmem:[#allocation2 + $0x38] sm:$0xff]
    %v52 = vld [vmem:[#allocation2 + $0x40] sm:$0xff]
    %v53 = vld [vmem:[#allocation2 + $0x48] sm:$0xff]
    %v54 = vld [vmem:[#allocation2 + $0x50] sm:$0xff]
    %v55 = vld [vmem:[#allocation2 + $0x58] sm:$0xff]
    %v56 = vld [vmem:[#allocation2 + $0x60] sm:$0xff]
    %v57 = vld [vmem:[#allocation2 + $0x68] sm:$0xff]
    %v58 = vld [vmem:[#allocation2 + $0x70] sm:$0xff]
    %v59 = vld [vmem:[#allocation2 + $0x78] sm:$0xff]
    %v60 = vld [vmem:[#allocation2 + $0x80] sm:$0xff]
    %v61 = vld [vmem:[#allocation2 + $0x88] sm:$0xff]
    %v62 = vld [vmem:[#allocation2 + $0x90] sm:$0xff]
    %v63 = vld [vmem:[#allocation2 + $0x98] sm:$0xff]
    %v64 = vld [vmem:[#allocation2 + $0xa0] sm:$0xff]
    %v65 = vld [vmem:[#allocation2 + $0xa8] sm:$0xff]
    %v66 = vld [vmem:[#allocation2 + $0xb0] sm:$0xff]
    %v67 = vld [vmem:[#allocation2 + $0xb8] sm:$0xff]
    %v68 = vld [vmem:[#allocation2 + $0xc0] sm:$0xff]
    %v69 = vld [vmem:[#allocation2 + $0xc8] sm:$0xff]
    %v70 = vld [vmem:[#allocation2 + $0xd0] sm:$0xff]
    %v71 = vld [vmem:[#allocation2 + $0xd8] sm:$0xff]
    %v72 = vld [vmem:[#allocation2 + $0xe0] sm:$0xff]
    %v73 = vld [vmem:[#allocation2 + $0xe8] sm:$0xff]
    %v74 = vld [vmem:[#allocation2 + $0xf0] sm:$0xff]
    %v75 = vld [vmem:[#allocation2 + $0xf8] sm:$0xff]
    %v76 = vld [vmem:[#allocation5] sm:$0xff]
    %v77 = vld [vmem:[#allocation5 + $0x8] sm:$0xff]
    %v78 = vld [vmem:[#allocation5 + $0x10] sm:$0xff]
    %v79 = vld [vmem:[#allocation5 + $0x18] sm:$0xff]
    %v80 = vld [vmem:[#allocation5 + $0x20] sm:$0xff]
    %v81 = vld [vmem:[#allocation5 + $0x28] sm:$0xff]
    %v82 = vld [vmem:[#allocation5 + $0x30] sm:$0xff]
    %v83 = vld [vmem:[#allocation5 + $0x38] sm:$0xff]
    %v84 = vld [vmem:[#allocation5 + $0x40] sm:$0xff]
    %v85 = vld [vmem:[#allocation5 + $0x48] sm:$0xff]
    %v86 = vld [vmem:[#allocation5 + $0x50] sm:$0xff]
    %v87 = vld [vmem:[#allocation5 + $0x58] sm:$0xff]
    %v88 = vld [vmem:[#allocation5 + $0x60] sm:$0xff]
    %v89 = vld [vmem:[#allocation5 + $0x68] sm:$0xff]
    %v90 = vld [vmem:[#allocation5 + $0x70] sm:$0xff]
    %v91 = vld [vmem:[#allocation5 + $0x78] sm:$0xff]
    %v92 = vld [vmem:[#allocation5 + $0x80] sm:$0xff]
    %v93 = vld [vmem:[#allocation5 + $0x88] sm:$0xff]
    %v94 = vld [vmem:[#allocation5 + $0x90] sm:$0xff]
    %v95 = vld [vmem:[#allocation5 + $0x98] sm:$0xff]
    %v96 = vld [vmem:[#allocation5 + $0xa0] sm:$0xff]
    %v97 = vld [vmem:[#allocation5 + $0xa8] sm:$0xff]
    %v98 = vld [vmem:[#allocation5 + $0xb0] sm:$0xff]
    %v99 = vld [vmem:[#allocation5 + $0xb8] sm:$0xff]
    %v100 = vld [vmem:[#allocation5 + $0xc0] sm:$0xff]
    %v101 = vld [vmem:[#allocation5 + $0xc8] sm:$0xff]
    %v102 = vld [vmem:[#allocation5 + $0xd0] sm:$0xff]
    %v103 = vld [vmem:[#allocation5 + $0xd8] sm:$0xff]
    %v104 = vld [vmem:[#allocation5 + $0xe0] sm:$0xff]
    %v105 = vld [vmem:[#allocation5 + $0xe8] sm:$0xff]
    %v106 = vld [vmem:[#allocation5 + $0xf0] sm:$0xff]
    %v107 = vld [vmem:[#allocation5 + $0xf8] sm:$0xff]
    %v108 = vpack.c.bf16 %v77, %v76
    %v109 = vpack.c.bf16 %v79, %v78
    %v110 = vpack.c.bf16 %v81, %v80
    %v111 = vpack.c.bf16 %v83, %v82
    %v112 = vpack.c.bf16 %v85, %v84
    %v113 = vpack.c.bf16 %v87, %v86
    %v114 = vpack.c.bf16 %v89, %v88
    %v115 = vpack.c.bf16 %v91, %v90
    %v116 = vpack.c.bf16 %v93, %v92
    %v117 = vpack.c.bf16 %v95, %v94
    %v118 = vpack.c.bf16 %v97, %v96
    %v119 = vpack.c.bf16 %v99, %v98
    %v120 = vpack.c.bf16 %v101, %v100
    %v121 = vpack.c.bf16 %v103, %v102
    %v122 = vpack.c.bf16 %v105, %v104
    %v123 = vpack.c.bf16 %v107, %v106
    %v156 = vunpack.c.l.b16 %v44
    %v157 = vunpack.c.h.b16 %v44
    %v158 = vunpack.c.l.b16 %v45
    %v159 = vunpack.c.h.b16 %v45
    %v160 = vunpack.c.l.b16 %v46
    %v161 = vunpack.c.h.b16 %v46
    %v162 = vunpack.c.l.b16 %v47
    %v163 = vunpack.c.h.b16 %v47
    %v164 = vunpack.c.l.b16 %v48
    %v165 = vunpack.c.h.b16 %v48
    %v166 = vunpack.c.l.b16 %v49
    %v167 = vunpack.c.h.b16 %v49
    %v168 = vunpack.c.l.b16 %v50
    %v169 = vunpack.c.h.b16 %v50
    %v170 = vunpack.c.l.b16 %v51
    %v171 = vunpack.c.h.b16 %v51
    %v172 = vunpack.c.l.b16 %v52
    %v173 = vunpack.c.h.b16 %v52
    %v174 = vunpack.c.l.b16 %v53
    %v175 = vunpack.c.h.b16 %v53
    %v176 = vunpack.c.l.b16 %v54
    %v177 = vunpack.c.h.b16 %v54
    %v178 = vunpack.c.l.b16 %v55
    %v179 = vunpack.c.h.b16 %v55
    %v180 = vunpack.c.l.b16 %v56
    %v181 = vunpack.c.h.b16 %v56
    %v182 = vunpack.c.l.b16 %v57
    %v183 = vunpack.c.h.b16 %v57
    %v184 = vunpack.c.l.b16 %v58
    %v185 = vunpack.c.h.b16 %v58
    %v186 = vunpack.c.l.b16 %v59
    %v187 = vunpack.c.h.b16 %v59
    %v188 = vunpack.c.l.b16 %v60
    %v189 = vunpack.c.h.b16 %v60
    %v190 = vunpack.c.l.b16 %v61
    %v191 = vunpack.c.h.b16 %v61
    %v192 = vunpack.c.l.b16 %v62
    %v193 = vunpack.c.h.b16 %v62
    %v194 = vunpack.c.l.b16 %v63
    %v195 = vunpack.c.h.b16 %v63
    %v196 = vunpack.c.l.b16 %v64
    %v197 = vunpack.c.h.b16 %v64
    %v198 = vunpack.c.l.b16 %v65
    %v199 = vunpack.c.h.b16 %v65
    %v200 = vunpack.c.l.b16 %v66
    %v201 = vunpack.c.h.b16 %v66
    %v202 = vunpack.c.l.b16 %v67
    %v203 = vunpack.c.h.b16 %v67
    %v204 = vunpack.c.l.b16 %v68
    %v205 = vunpack.c.h.b16 %v68
    %v206 = vunpack.c.l.b16 %v69
    %v207 = vunpack.c.h.b16 %v69
    %v208 = vunpack.c.l.b16 %v70
    %v209 = vunpack.c.h.b16 %v70
    %v210 = vunpack.c.l.b16 %v71
    %v211 = vunpack.c.h.b16 %v71
    %v212 = vunpack.c.l.b16 %v72
    %v213 = vunpack.c.h.b16 %v72
    %v214 = vunpack.c.l.b16 %v73
    %v215 = vunpack.c.h.b16 %v73
    %v216 = vunpack.c.l.b16 %v74
    %v217 = vunpack.c.h.b16 %v74
    %v218 = vunpack.c.l.b16 %v75
    %v219 = vunpack.c.h.b16 %v75
    %v220 = vpack.c.b16 %v158, %v156
    %v221 = vpack.c.b16 %v159, %v157
    %v222 = vpack.c.b16 %v162, %v160
    %v223 = vpack.c.b16 %v163, %v161
    %v224 = vpack.c.b16 %v166, %v164
    %v225 = vpack.c.b16 %v167, %v165
    %v226 = vpack.c.b16 %v170, %v168
    %v227 = vpack.c.b16 %v171, %v169
    %v228 = vpack.c.b16 %v174, %v172
    %v229 = vpack.c.b16 %v175, %v173
    %v230 = vpack.c.b16 %v178, %v176
    %v231 = vpack.c.b16 %v179, %v177
    %v232 = vpack.c.b16 %v182, %v180
    %v233 = vpack.c.b16 %v183, %v181
    %v234 = vpack.c.b16 %v186, %v184
    %v235 = vpack.c.b16 %v187, %v185
    %v236 = vpack.c.b16 %v190, %v188
    %v237 = vpack.c.b16 %v191, %v189
    %v238 = vpack.c.b16 %v194, %v192
    %v239 = vpack.c.b16 %v195, %v193
    %v240 = vpack.c.b16 %v198, %v196
    %v241 = vpack.c.b16 %v199, %v197
    %v242 = vpack.c.b16 %v202, %v200
    %v243 = vpack.c.b16 %v203, %v201
    %v244 = vpack.c.b16 %v206, %v204
    %v245 = vpack.c.b16 %v207, %v205
    %v246 = vpack.c.b16 %v210, %v208
    %v247 = vpack.c.b16 %v211, %v209
    %v248 = vpack.c.b16 %v214, %v212
    %v249 = vpack.c.b16 %v215, %v213
    %v250 = vpack.c.b16 %v218, %v216
    %v251 = vpack.c.b16 %v219, %v217
    %284 = vmatpush.bf16.msra.mxu0 %v115
    %285 = vmatpush.bf16.msra.mxu0 %v114
    %286 = vmatpush.bf16.msra.mxu0 %v113
    %287 = vmatpush.bf16.msra.mxu0 %v112
    %288 = vmatpush.bf16.msra.mxu0 %v111
    %289 = vmatpush.bf16.msra.mxu0 %v110
    %290 = vmatpush.bf16.msra.mxu0 %v109
    %291 = vmatpush.bf16.msra.mxu0 %v108
    %292 = vmatmul.bf16.gmra.mxu0 %v220
    %v293 = vpop.f32.mrf.mxu0
    %v294 = vadd.f32 0.0, %v293
    %v295 = vpop.f32.mrf.mxu0
    %v296 = vadd.f32 0.0, %v295
    %297 = vmatmul.bf16.gmra.mxu0 %v222
    %v298 = vpop.f32.mrf.mxu0
    %v299 = vadd.f32 0.0, %v298
    %v300 = vpop.f32.mrf.mxu0
    %v301 = vadd.f32 0.0, %v300
    %302 = vmatmul.bf16.gmra.mxu0 %v224
    %v303 = vpop.f32.mrf.mxu0
    %v304 = vadd.f32 0.0, %v303
    %v305 = vpop.f32.mrf.mxu0
    %v306 = vadd.f32 0.0, %v305
    %307 = vmatmul.bf16.gmra.mxu0 %v226
    %v308 = vpop.f32.mrf.mxu0
    %v309 = vadd.f32 0.0, %v308
    %v310 = vpop.f32.mrf.mxu0
    %v311 = vadd.f32 0.0, %v310
    %312 = vmatmul.bf16.gmra.mxu0 %v228
    %v313 = vpop.f32.mrf.mxu0
    %v314 = vadd.f32 0.0, %v313
    %v315 = vpop.f32.mrf.mxu0
    %v316 = vadd.f32 0.0, %v315
    %317 = vmatmul.bf16.gmra.mxu0 %v230
    %v318 = vpop.f32.mrf.mxu0
    %v319 = vadd.f32 0.0, %v318
    %v320 = vpop.f32.mrf.mxu0
    %v321 = vadd.f32 0.0, %v320
    %322 = vmatmul.bf16.gmra.mxu0 %v232
    %v323 = vpop.f32.mrf.mxu0
    %v324 = vadd.f32 0.0, %v323
    %v325 = vpop.f32.mrf.mxu0
    %v326 = vadd.f32 0.0, %v325
    %327 = vmatmul.bf16.gmra.mxu0 %v234
    %v328 = vpop.f32.mrf.mxu0
    %v329 = vadd.f32 0.0, %v328
    %v330 = vpop.f32.mrf.mxu0
    %v331 = vadd.f32 0.0, %v330
    %332 = vmatmul.bf16.gmra.mxu0 %v236
    %v333 = vpop.f32.mrf.mxu0
    %v334 = vadd.f32 0.0, %v333
    %v335 = vpop.f32.mrf.mxu0
    %v336 = vadd.f32 0.0, %v335
    %337 = vmatmul.bf16.gmra.mxu0 %v238
    %v338 = vpop.f32.mrf.mxu0
    %v339 = vadd.f32 0.0, %v338
    %v340 = vpop.f32.mrf.mxu0
    %v341 = vadd.f32 0.0, %v340
    %342 = vmatmul.bf16.gmra.mxu0 %v240
    %v343 = vpop.f32.mrf.mxu0
    %v344 = vadd.f32 0.0, %v343
    %v345 = vpop.f32.mrf.mxu0
    %v346 = vadd.f32 0.0, %v345
    %347 = vmatmul.bf16.gmra.mxu0 %v242
    %v348 = vpop.f32.mrf.mxu0
    %v349 = vadd.f32 0.0, %v348
    %v350 = vpop.f32.mrf.mxu0
    %v351 = vadd.f32 0.0, %v350
    %352 = vmatmul.bf16.gmra.mxu0 %v244
    %v353 = vpop.f32.mrf.mxu0
    %v354 = vadd.f32 0.0, %v353
    %v355 = vpop.f32.mrf.mxu0
    %v356 = vadd.f32 0.0, %v355
    %357 = vmatmul.bf16.gmra.mxu0 %v246
    %v358 = vpop.f32.mrf.mxu0
    %v359 = vadd.f32 0.0, %v358
    %v360 = vpop.f32.mrf.mxu0
    %v361 = vadd.f32 0.0, %v360
    %362 = vmatmul.bf16.gmra.mxu0 %v248
    %v363 = vpop.f32.mrf.mxu0
    %v364 = vadd.f32 0.0, %v363
    %v365 = vpop.f32.mrf.mxu0
    %v366 = vadd.f32 0.0, %v365
    %367 = vmatmul.bf16.gmra.mxu0 %v250
    %v368 = vpop.f32.mrf.mxu0
    %v369 = vadd.f32 0.0, %v368
    %v370 = vpop.f32.mrf.mxu0
    %v371 = vadd.f32 0.0, %v370
    %372 = vdwg.mxu0
    %373 = vmatpush.bf16.msra.mxu0 %v123
    %374 = vmatpush.bf16.msra.mxu0 %v122
    %375 = vmatpush.bf16.msra.mxu0 %v121
    %376 = vmatpush.bf16.msra.mxu0 %v120
    %377 = vmatpush.bf16.msra.mxu0 %v119
    %378 = vmatpush.bf16.msra.mxu0 %v118
    %379 = vmatpush.bf16.msra.mxu0 %v117
    %380 = vmatpush.bf16.msra.mxu0 %v116
    %381 = vmatmul.bf16.gmra.mxu0 %v221
    %v382 = vpop.f32.mrf.mxu0
    %v383 = vadd.f32 %v294, %v382
    %v384 = vpop.f32.mrf.mxu0
    %v385 = vadd.f32 %v296, %v384
    %386 = vmatmul.bf16.gmra.mxu0 %v223
    %v387 = vpop.f32.mrf.mxu0
    %v388 = vadd.f32 %v299, %v387
    %v389 = vpop.f32.mrf.mxu0
    %v390 = vadd.f32 %v301, %v389
    %391 = vmatmul.bf16.gmra.mxu0 %v225
    %v392 = vpop.f32.mrf.mxu0
    %v393 = vadd.f32 %v304, %v392
    %v394 = vpop.f32.mrf.mxu0
    %v395 = vadd.f32 %v306, %v394
    %396 = vmatmul.bf16.gmra.mxu0 %v227
    %v397 = vpop.f32.mrf.mxu0
    %v398 = vadd.f32 %v309, %v397
    %v399 = vpop.f32.mrf.mxu0
    %v400 = vadd.f32 %v311, %v399
    %401 = vmatmul.bf16.gmra.mxu0 %v229
    %v402 = vpop.f32.mrf.mxu0
    %v403 = vadd.f32 %v314, %v402
    %v404 = vpop.f32.mrf.mxu0
    %v405 = vadd.f32 %v316, %v404
    %406 = vmatmul.bf16.gmra.mxu0 %v231
    %v407 = vpop.f32.mrf.mxu0
    %v408 = vadd.f32 %v319, %v407
    %v409 = vpop.f32.mrf.mxu0
    %v410 = vadd.f32 %v321, %v409
    %411 = vmatmul.bf16.gmra.mxu0 %v233
    %v412 = vpop.f32.mrf.mxu0
    %v413 = vadd.f32 %v324, %v412
    %v414 = vpop.f32.mrf.mxu0
    %v415 = vadd.f32 %v326, %v414
    %416 = vmatmul.bf16.gmra.mxu0 %v235
    %v417 = vpop.f32.mrf.mxu0
    %v418 = vadd.f32 %v329, %v417
    %v419 = vpop.f32.mrf.mxu0
    %v420 = vadd.f32 %v331, %v419
    %421 = vmatmul.bf16.gmra.mxu0 %v237
    %v422 = vpop.f32.mrf.mxu0
    %v423 = vadd.f32 %v334, %v422
    %v424 = vpop.f32.mrf.mxu0
    %v425 = vadd.f32 %v336, %v424
    %426 = vmatmul.bf16.gmra.mxu0 %v239
    %v427 = vpop.f32.mrf.mxu0
    %v428 = vadd.f32 %v339, %v427
    %v429 = vpop.f32.mrf.mxu0
    %v430 = vadd.f32 %v341, %v429
    %431 = vmatmul.bf16.gmra.mxu0 %v241
    %v432 = vpop.f32.mrf.mxu0
    %v433 = vadd.f32 %v344, %v432
    %v434 = vpop.f32.mrf.mxu0
    %v435 = vadd.f32 %v346, %v434
    %436 = vmatmul.bf16.gmra.mxu0 %v243
    %v437 = vpop.f32.mrf.mxu0
    %v438 = vadd.f32 %v349, %v437
    %v439 = vpop.f32.mrf.mxu0
    %v440 = vadd.f32 %v351, %v439
    %441 = vmatmul.bf16.gmra.mxu0 %v245
    %v442 = vpop.f32.mrf.mxu0
    %v443 = vadd.f32 %v354, %v442
    %v444 = vpop.f32.mrf.mxu0
    %v445 = vadd.f32 %v356, %v444
    %446 = vmatmul.bf16.gmra.mxu0 %v247
    %v447 = vpop.f32.mrf.mxu0
    %v448 = vadd.f32 %v359, %v447
    %v449 = vpop.f32.mrf.mxu0
    %v450 = vadd.f32 %v361, %v449
    %451 = vmatmul.bf16.gmra.mxu0 %v249
    %v452 = vpop.f32.mrf.mxu0
    %v453 = vadd.f32 %v364, %v452
    %v454 = vpop.f32.mrf.mxu0
    %v455 = vadd.f32 %v366, %v454
    %456 = vmatmul.bf16.gmra.mxu0 %v251
    %v457 = vpop.f32.mrf.mxu0
    %v458 = vadd.f32 %v369, %v457
    %v459 = vpop.f32.mrf.mxu0
    %v460 = vadd.f32 %v371, %v459
    %461 = vdwg.mxu0
    %462 = vst [vmem:[#allocation7] sm:$0xff] %v383
    %463 = vst [vmem:[#allocation7 + $0x8] sm:$0xff] %v385
    %464 = vst [vmem:[#allocation7 + $0x10] sm:$0xff] %v388
    %465 = vst [vmem:[#allocation7 + $0x18] sm:$0xff] %v390
    %466 = vst [vmem:[#allocation7 + $0x20] sm:$0xff] %v393
    %467 = vst [vmem:[#allocation7 + $0x28] sm:$0xff] %v395
    %468 = vst [vmem:[#allocation7 + $0x30] sm:$0xff] %v398
    %469 = vst [vmem:[#allocation7 + $0x38] sm:$0xff] %v400
    %470 = vst [vmem:[#allocation7 + $0x40] sm:$0xff] %v403
    %471 = vst [vmem:[#allocation7 + $0x48] sm:$0xff] %v405
    %472 = vst [vmem:[#allocation7 + $0x50] sm:$0xff] %v408
    %473 = vst [vmem:[#allocation7 + $0x58] sm:$0xff] %v410
    %474 = vst [vmem:[#allocation7 + $0x60] sm:$0xff] %v413
    %475 = vst [vmem:[#allocation7 + $0x68] sm:$0xff] %v415
    %476 = vst [vmem:[#allocation7 + $0x70] sm:$0xff] %v418
    %477 = vst [vmem:[#allocation7 + $0x78] sm:$0xff] %v420
    %478 = vst [vmem:[#allocation7 + $0x80] sm:$0xff] %v423
    %479 = vst [vmem:[#allocation7 + $0x88] sm:$0xff] %v425
    %480 = vst [vmem:[#allocation7 + $0x90] sm:$0xff] %v428
    %481 = vst [vmem:[#allocation7 + $0x98] sm:$0xff] %v430
    %482 = vst [vmem:[#allocation7 + $0xa0] sm:$0xff] %v433
    %483 = vst [vmem:[#allocation7 + $0xa8] sm:$0xff] %v435
    %484 = vst [vmem:[#allocation7 + $0xb0] sm:$0xff] %v438
    %485 = vst [vmem:[#allocation7 + $0xb8] sm:$0xff] %v440
    %486 = vst [vmem:[#allocation7 + $0xc0] sm:$0xff] %v443
    %487 = vst [vmem:[#allocation7 + $0xc8] sm:$0xff] %v445
    %488 = vst [vmem:[#allocation7 + $0xd0] sm:$0xff] %v448
    %489 = vst [vmem:[#allocation7 + $0xd8] sm:$0xff] %v450
    %490 = vst [vmem:[#allocation7 + $0xe0] sm:$0xff] %v453
    %491 = vst [vmem:[#allocation7 + $0xe8] sm:$0xff] %v455
    %492 = vst [vmem:[#allocation7 + $0xf0] sm:$0xff] %v458
    %493 = vst [vmem:[#allocation7 + $0xf8] sm:$0xff] %v460
    // Predicated region
    $region18: #{tpu_custom_call.1} parent=1 // pred_check
      _
    $region19: #{tpu_custom_call.1} parent=1 // pred_check_branch
      %495 = sbr.rel (0) target = $region21
    $region20: #{tpu_custom_call.1} parent=1 // pred_region
      %497 = vsyncadd [#allocation4], 0
      %s498 = sshll.u32 [#allocation7], 4
      %s499 = int_to_ptr.vmem [resolvable:$true] %s498
      %s500 = sshll.u32 %s2, 4
      %s501 = int_to_ptr.hbm [resolvable:$true] %s500
      %506 = dma.vmem_to_hbm [thread:$0]  %s499, 4096, %s501, [#allocation4], 128, 128, 8
    $region21: #{tpu_custom_call.1} parent=1 // pred_fallthru
      _
    // Predicated region
    $region22: #{tpu_custom_call.1} parent=1 // pred_check
      _
    $region23: #{tpu_custom_call.1} parent=1 // pred_check_branch
      %508 = sbr.rel (0) target = $region25
    $region24: #{tpu_custom_call.1} parent=1 // pred_region
      %510 = dma.done [#allocation4], 4096
    $region25: #{tpu_custom_call.1} parent=1 // pred_fallthru
      _
    %511 = vsyncpa [#allocation3], 1
    %512 = vsyncpa [#allocation6], 1
    %513 = vsyncpa [#allocation4], 1

</llo_original>
